<compile_context>
chip_gen: v6e
topology: v6e:2x2x1
jax: 0.10.0
libtpu: 0.0.40
codegen_flags: <defaults>
</compile_context>

<pallas_src>
import functools

import jax
import jax.numpy as jnp
from jax.experimental import pallas as pl
from jax.experimental.pallas import tpu as pltpu


# ---------------------------------------------------------------------------
# Kernel
# ---------------------------------------------------------------------------
def _global_attn_kernel(enc_ref, wt_ref, b_ref, us_ref, ctx_ref, attn_ref,
                        *, matmul_dtype, s_chunk):
    # enc_ref:  (TB, S, H)  encoder outputs for TB batch rows (f32 or bf16)
    # wt_ref:   (H, H)      attn Linear weight, pre-transposed to (in, out)
    # b_ref:    (1, H)      attn Linear bias
    # us_ref:   (1, H)      learned sentence-level query
    # ctx_ref:  (TB, H)     context output (lane-dense 2-D store)
    # attn_ref: (TB, S)     attention-weight output (lane-dense 2-D store)
    tb, s, h = enc_ref.shape

    wt = wt_ref[...]                          # (H, H) (in, out)
    bias = b_ref[...]                         # (1, H)
    us = us_ref[...]                          # (1, H)

    # energy = tanh(enc @ W.T + b): one (TB*S, H) @ (H, H) MXU matmul over all
    # TB*S rows.  NOTE: the reshapes are free views when S % 8 == 0; otherwise
    # Mosaic materializes copies (perf only; accounted for in the VMEM budget).
    lhs = enc_ref[...].reshape(tb * s, h)
    if lhs.dtype != matmul_dtype:
        lhs = lhs.astype(matmul_dtype)
    rhs = wt if wt.dtype == matmul_dtype else wt.astype(matmul_dtype)
    energy = jnp.tanh(
        jnp.dot(lhs, rhs, preferred_element_type=jnp.float32) + bias)
    energy3 = energy.reshape(tb, s, h)        # (TB, S, H) f32

    # Luong score with query us: VPU multiply + XLU lane reduce (no degenerate
    # N=1 MXU matmul).  scores is (TB, S), S on the lane axis.
    scores = jnp.sum(energy3 * us, axis=-1)

    # Softmax over the sequence axis (torch dim=1), all f32.  Exact reciprocal:
    # the attention weights are a module output and must sum to 1.
    m = jnp.max(scores, axis=-1, keepdims=True)            # (TB, 1)
    e = jnp.exp(scores - m)                                 # (TB, S)
    denom = jnp.sum(e, axis=-1, keepdims=True)              # (TB, 1)
    a = e * pl.reciprocal(denom)                            # (TB, S)

    # context = sum_s a[b,s] * enc[b,s,:]: VPU multiply + sublane reduce,
    # accumulated over S in chunks so the f32 broadcast product never exceeds
    # (TB, s_chunk, H) of VMEM.
    ctx = jnp.zeros((tb, h), dtype=jnp.float32)
    for c in range(s // s_chunk):
        sl = slice(c * s_chunk, (c + 1) * s_chunk)
        enc_c = enc_ref[:, sl, :].astype(jnp.float32)        # (TB, sc, H)
        ctx = ctx + jnp.sum(a[:, sl, None] * enc_c, axis=1)  # (TB, H)

    ctx_ref[...] = ctx.astype(ctx_ref.dtype)                 # (TB, H)
    attn_ref[...] = a.astype(attn_ref.dtype)                 # (TB, S)


# ---------------------------------------------------------------------------
# Block / VMEM sizing
# ---------------------------------------------------------------------------
def _tpu_vmem_capacity_bytes():
    try:
        return int(pltpu.get_tpu_info().vmem_capacity_bytes)
    except Exception:
        return 128 << 20                      # v5e / v6e class default


def _vmem_budgets():
    """(block-selection budget, cap on the requested vmem_limit_bytes)."""
    cap = _tpu_vmem_capacity_bytes()
    if cap <= (96 << 20):                     # v7x-class: 64 MiB per TensorCore
        return 40 << 20, 52 << 20
    return 84 << 20, 100 << 20                # v5e / v6e: 128 MiB physical


def _choose_s_chunk(seq, max_chunk=512):
    """Largest divisor of S that is <= max_chunk (caps the a*enc f32 temp)."""
    if seq <= max_chunk:
        return seq
    best = 1
    for d in range(1, max_chunk + 1):
        if seq % d == 0:
            best = d
    return best


def _vmem_per_step_bytes(tb, seq, hidden, s_chunk, enc_itemsize, mm_itemsize):
    """Conservative per-grid-step VMEM estimate: double-buffered pipeline blocks
    PLUS in-kernel temporaries (energy, matmul-operand cast, reshape copies when
    S % 8 != 0, chunked a*enc product, softmax scratch)."""
    f32 = 4
    enc_elems = tb * seq * hidden
    est = 2 * enc_elems * enc_itemsize             # enc input, double-buffered
    est += 2 * hidden * hidden * f32               # weight, double-buffered
    est += 4 * hidden * f32                        # bias + us
    est += 2 * tb * (hidden + seq) * f32           # outputs, double-buffered
    est += enc_elems * f32                         # energy (f32)
    if mm_itemsize != enc_itemsize:
        est += enc_elems * mm_itemsize             # matmul-operand cast of enc
    if seq % 8:
        est += 2 * enc_elems * f32                 # reshape copies (not views)
    est += tb * s_chunk * hidden * f32             # chunked a*enc product
    est += 8 * tb * max(seq, hidden) * f32         # softmax / small temporaries
    return est


def _choose_block_b(batch, seq, hidden, s_chunk, enc_itemsize, mm_itemsize,
                    block_budget):
    """Largest TB that fits the VMEM budget, with:
      (a) TB % 8 == 0 or TB == B, so the 2-D (TB, H)/(TB, S) output BlockSpecs
          satisfy the (8, 128) sublane/lane tiling rule; and
      (b) keep >= 2 (preferably an even number of) grid steps when that costs
          at most 2x in block size, so v7x's two TensorCores both get work."""
    cands = [d for d in range(1, batch + 1)
             if batch % d == 0 and (d % 8 == 0 or d == batch)]
    fits = [d for d in cands
            if _vmem_per_step_bytes(d, seq, hidden, s_chunk,
                                    enc_itemsize, mm_itemsize) <= block_budget]
    if not fits:
        # TODO(synk): very large S*H per row -- needs the S-axis online-softmax
        # grid; fall back to the smallest legal block and a raised vmem limit.
        return min(cands)
    tb = max(fits)
    multi = [d for d in fits if batch // d >= 2]
    if multi and 2 * max(multi) >= tb:
        tb = max(multi)
        even = [d for d in multi if (batch // d) % 2 == 0]
        if even and 2 * max(even) >= tb:
            tb = max(even)
    return tb


# ---------------------------------------------------------------------------
# Wrapper
# ---------------------------------------------------------------------------
def _jax_reference(encoder_outputs, w_t, b, us):
    """Pure-XLA GlobalAttn (also the small-problem fallback)."""
    enc = encoder_outputs.astype(jnp.float32)
    energy = jnp.tanh(jnp.einsum("bsh,ho->bso", enc, w_t) + b)      # (B,S,H)
    scores = jnp.einsum("bsh,h->bs", energy, us[0])                 # (B,S)
    a = jax.nn.softmax(scores, axis=-1)                             # (B,S)
    context = jnp.einsum("bs,bsh->bh", a, enc)                      # (B,H)
    return context, a[:, None, :]


def global_attn(encoder_outputs, w_t, b, us, *, block_b=None, matmul_dtype=None,
                use_pallas=None):
    """Sentence-level attention (GlobalAttn.forward).

    encoder_outputs: (B, S, H), float32 or bfloat16.  Passing bf16 (cast once
        upstream, in the encoder) halves HBM traffic for this HBM-bound kernel;
        accumulation and softmax stay float32 in-kernel.
    w_t: (H, H) attn Linear weight PRE-TRANSPOSED to (in, out) layout.
    b:   (H,)  attn Linear bias.
    us:  (1, H) learned sentence-level query.
    Returns (context: (B, H) f32, attn_weights: (B, 1, S) f32).
    """
    B, S, H = encoder_outputs.shape
    enc_itemsize = jnp.dtype(encoder_outputs.dtype).itemsize

    if use_pallas is None:
        # Tiny problems: fused XLA beats the per-step / launch overhead and the
        # <128-lane MXU fill of a Pallas call.
        use_pallas = B * S * H * enc_itemsize >= (2 << 20)
    if not use_pallas:
        return _jax_reference(encoder_outputs, w_t, b, us)

    if matmul_dtype is None:
        # bf16 MXU operands whenever enc is already bf16 in HBM (also the right
        # choice on v5e's bf16-native MXU); keep f32 operands for f32 inputs.
        matmul_dtype = (jnp.bfloat16 if encoder_outputs.dtype == jnp.bfloat16
                        else jnp.float32)
    mm_itemsize = jnp.dtype(matmul_dtype).itemsize

    s_chunk = _choose_s_chunk(S)
    block_budget, limit_cap = _vmem_budgets()
    tb = (_choose_block_b(B, S, H, s_chunk, enc_itemsize, mm_itemsize,
                          block_budget)
          if block_b is None else block_b)
    assert B % tb == 0, (B, tb)
    est = _vmem_per_step_bytes(tb, S, H, s_chunk, enc_itemsize, mm_itemsize)
    vmem_limit = int(min(max(est + (8 << 20), 32 << 20), limit_cap))

    b2 = b.reshape(1, H)
    kernel = functools.partial(_global_attn_kernel, matmul_dtype=matmul_dtype,
                               s_chunk=s_chunk)

    ctx, attn = pl.pallas_call(
        kernel,
        out_shape=(
            jax.ShapeDtypeStruct((B, H), jnp.float32),
            jax.ShapeDtypeStruct((B, S), jnp.float32),
        ),
        grid_spec=pltpu.PrefetchScalarGridSpec(
            num_scalar_prefetch=0,
            grid=(B // tb,),
            in_specs=[
                pl.BlockSpec((tb, S, H), lambda i: (i, 0, 0)),
                # TODO(synk): single-buffer these grid-invariant operands
                # (pl.Buffered(1)) once validated; their double buffer is
                # accounted for in the VMEM budget instead.
                pl.BlockSpec((H, H), lambda i: (0, 0)),
                pl.BlockSpec((1, H), lambda i: (0, 0)),
                pl.BlockSpec((1, H), lambda i: (0, 0)),
            ],
            out_specs=[
                pl.BlockSpec((tb, H), lambda i: (i, 0)),
                pl.BlockSpec((tb, S), lambda i: (i, 0)),
            ],
        ),
        compiler_params=pltpu.CompilerParams(
            dimension_semantics=("parallel",),
            vmem_limit_bytes=vmem_limit,
        ),
    )(encoder_outputs, w_t, b2, us)

    return ctx, attn[:, None, :]              # context (B,H), attn (B,1,S)


# ---------------------------------------------------------------------------
# Self-test
# ---------------------------------------------------------------------------
if __name__ == "__main__":
    B, S, H = 2, 8, 32
    key = jax.random.PRNGKey(0)
    k_enc, k_w, k_b, k_us = jax.random.split(key, 4)

    encoder_outputs = jax.random.normal(k_enc, (B, S, H), dtype=jnp.float32)

    # Deterministic parameter init mimicking nn.Linear / uniform(-1,1) for us.
    bound = 1.0 / (H ** 0.5)
    w = jax.random.uniform(k_w, (H, H), minval=-bound, maxval=bound,
                           dtype=jnp.float32)           # Linear weight (out, in)
    b = jax.random.uniform(k_b, (H,), minval=-bound, maxval=bound,
                           dtype=jnp.float32)           # Linear bias
    us = jax.random.uniform(k_us, (1, H), minval=-1.0, maxval=1.0,
                            dtype=jnp.float32)          # sentence query vector

    # Pre-transpose the Linear weight ONCE (hoisted out of the per-call path).
    w_t = jnp.asarray(w.T)

    ref_ctx, ref_attn = _jax_reference(encoder_outputs, w_t, b, us)

    # --- Pallas path (forced: the default dispatch sends tiny shapes to XLA) --
    attn_fn = jax.jit(functools.partial(global_attn, use_pallas=True))
    context, attn_weights = attn_fn(encoder_outputs, w_t, b, us)
    jax.block_until_ready((context, attn_weights))
    assert context.shape == (B, H)
    assert attn_weights.shape == (B, 1, S)
    assert jnp.allclose(context, ref_ctx, atol=1e-3, rtol=1e-3)
    assert jnp.allclose(attn_weights, ref_attn, atol=1e-3, rtol=1e-3)
    # exact-reciprocal softmax -> attention weights sum to 1
    assert jnp.allclose(jnp.sum(attn_weights, axis=-1), 1.0, atol=1e-5)

    # --- bf16 encoder outputs in HBM (halves HBM traffic; f32 accumulate) -----
    enc_bf16 = encoder_outputs.astype(jnp.bfloat16)
    bf16_fn = jax.jit(functools.partial(global_attn, use_pallas=True))
    ctx_bf16, attn_bf16 = bf16_fn(enc_bf16, w_t, b, us)
    jax.block_until_ready((ctx_bf16, attn_bf16))
    ref_ctx16, ref_attn16 = _jax_reference(enc_bf16, w_t, b, us)
    assert jnp.allclose(ctx_bf16, ref_ctx16, atol=5e-2, rtol=5e-2)
    assert jnp.allclose(attn_bf16, ref_attn16, atol=5e-2, rtol=5e-2)

    # --- Default dispatch: tiny problem -> fused-XLA fallback, same semantics --
    ctx_fb, attn_fb = jax.jit(global_attn)(encoder_outputs, w_t, b, us)
    jax.block_until_ready((ctx_fb, attn_fb))
    assert jnp.allclose(ctx_fb, ref_ctx, atol=1e-5, rtol=1e-5)
    assert jnp.allclose(attn_fb, ref_attn, atol=1e-5, rtol=1e-5)

    print("KERNEL_OK")
</pallas_src>

<mosaic_0001>
module attributes {stable_mosaic.version = 11 : i64} {
  func.func @_global_attn_kernel(%arg0: i32, %arg1: memref<2x8x32xf32, #tpu.memory_space<vmem>>, %arg2: memref<32x32xf32, #tpu.memory_space<vmem>>, %arg3: memref<1x32xf32, #tpu.memory_space<vmem>>, %arg4: memref<1x32xf32, #tpu.memory_space<vmem>>, %arg5: memref<2x32xf32, #tpu.memory_space<vmem>>, %arg6: memref<2x8xf32, #tpu.memory_space<vmem>>) attributes {dimension_semantics = [#tpu.dimension_semantics<parallel>], iteration_bounds = array<i64: 1>, scalar_prefetch = 0 : i64, scratch_operands = 0 : i64, tpu.core_type = #tpu.core_type<tc>, window_params = [{transform_indices = @transform_0, window_bounds = array<i64: 2, 8, 32>}, {pipeline_mode = #tpu.pipeline_mode<synchronous>, transform_indices = @transform_1, window_bounds = array<i64: 32, 32>}, {pipeline_mode = #tpu.pipeline_mode<synchronous>, transform_indices = @transform_2, window_bounds = array<i64: 1, 32>}, {pipeline_mode = #tpu.pipeline_mode<synchronous>, transform_indices = @transform_3, window_bounds = array<i64: 1, 32>}, {transform_indices = @transform_4, window_bounds = array<i64: 2, 32>}, {transform_indices = @transform_5, window_bounds = array<i64: 2, 8>}]} {
    %c0 = arith.constant 0 : index
    %c0_0 = arith.constant 0 : index
    %0 = vector.load %arg2[%c0, %c0_0] : memref<32x32xf32, #tpu.memory_space<vmem>>, vector<32x32xf32>
    %c0_1 = arith.constant 0 : index
    %c0_2 = arith.constant 0 : index
    %1 = vector.load %arg3[%c0_1, %c0_2] : memref<1x32xf32, #tpu.memory_space<vmem>>, vector<1x32xf32>
    %c0_3 = arith.constant 0 : index
    %c0_4 = arith.constant 0 : index
    %2 = vector.load %arg4[%c0_3, %c0_4] : memref<1x32xf32, #tpu.memory_space<vmem>>, vector<1x32xf32>
    %c0_5 = arith.constant 0 : index
    %c0_6 = arith.constant 0 : index
    %c0_7 = arith.constant 0 : index
    %3 = vector.load %arg1[%c0_5, %c0_6, %c0_7] : memref<2x8x32xf32, #tpu.memory_space<vmem>>, vector<2x8x32xf32>
    %4 = vector.shape_cast %3 : vector<2x8x32xf32> to vector<16x32xf32>
    %cst = arith.constant dense<0.000000e+00> : vector<16x32xf32>
    %5 = tpu.matmul %4, %0, %cst {dimension_numbers = #tpu.dot_dimension_numbers<[1], [0], [0], [1], [0, 0, 1, 1], [], []>} : vector<16x32xf32>, vector<32x32xf32>, vector<16x32xf32> -> vector<16x32xf32>
    %6 = vector.broadcast %1 : vector<1x32xf32> to vector<16x32xf32>
    %7 = arith.addf %5, %6 : vector<16x32xf32>
    %8 = math.tanh %7 : vector<16x32xf32>
    %9 = vector.shape_cast %8 : vector<16x32xf32> to vector<2x8x32xf32>
    %10 = vector.shape_cast %2 : vector<1x32xf32> to vector<1x1x32xf32>
    %11 = vector.broadcast %10 : vector<1x1x32xf32> to vector<2x8x32xf32>
    %12 = arith.mulf %9, %11 : vector<2x8x32xf32>
    %cst_8 = arith.constant dense<0.000000e+00> : vector<2x8xf32>
    %13 = vector.multi_reduction <add>, %12, %cst_8 [2] : vector<2x8x32xf32> to vector<2x8xf32>
    %cst_9 = arith.constant dense<0xFF800000> : vector<2xf32>
    %14 = vector.multi_reduction <maximumf>, %13, %cst_9 [1] : vector<2x8xf32> to vector<2xf32>
    %15 = vector.shape_cast %14 : vector<2xf32> to vector<2x1xf32>
    %16 = vector.broadcast %15 : vector<2x1xf32> to vector<2x8xf32>
    %17 = arith.subf %13, %16 : vector<2x8xf32>
    %18 = math.exp %17 : vector<2x8xf32>
    %cst_10 = arith.constant dense<0.000000e+00> : vector<2xf32>
    %19 = vector.multi_reduction <add>, %18, %cst_10 [1] : vector<2x8xf32> to vector<2xf32>
    %20 = vector.shape_cast %19 : vector<2xf32> to vector<2x1xf32>
    %21 = tpu.reciprocal %20 : vector<2x1xf32> -> vector<2x1xf32>
    %22 = vector.broadcast %21 : vector<2x1xf32> to vector<2x8xf32>
    %23 = arith.mulf %18, %22 : vector<2x8xf32>
    %cst_11 = arith.constant 0.000000e+00 : f32
    %24 = vector.broadcast %cst_11 : f32 to vector<2x32xf32>
    %c0_12 = arith.constant 0 : index
    %c0_13 = arith.constant 0 : index
    %c0_14 = arith.constant 0 : index
    %25 = vector.load %arg1[%c0_12, %c0_13, %c0_14] : memref<2x8x32xf32, #tpu.memory_space<vmem>>, vector<2x8x32xf32>
    %26 = vector.shape_cast %23 : vector<2x8xf32> to vector<2x8x1xf32>
    %27 = vector.broadcast %26 : vector<2x8x1xf32> to vector<2x8x32xf32>
    %28 = arith.mulf %27, %25 : vector<2x8x32xf32>
    %cst_15 = arith.constant dense<0.000000e+00> : vector<2x32xf32>
    %29 = vector.multi_reduction <add>, %28, %cst_15 [1] : vector<2x8x32xf32> to vector<2x32xf32>
    %30 = arith.addf %24, %29 : vector<2x32xf32>
    %c0_16 = arith.constant 0 : index
    %c0_17 = arith.constant 0 : index
    %31 = vector.load %arg5[%c0_16, %c0_17] : memref<2x32xf32, #tpu.memory_space<vmem>>, vector<2x32xf32>
    tpu.vector_store %arg5[%c0_16, %c0_17], %30 {strides = array<i32>} : memref<2x32xf32, #tpu.memory_space<vmem>>, vector<2x32xf32>,
    %c0_18 = arith.constant 0 : index
    %c0_19 = arith.constant 0 : index
    %32 = vector.load %arg6[%c0_18, %c0_19] : memref<2x8xf32, #tpu.memory_space<vmem>>, vector<2x8xf32>
    tpu.vector_store %arg6[%c0_18, %c0_19], %23 {strides = array<i32>} : memref<2x8xf32, #tpu.memory_space<vmem>>, vector<2x8xf32>,
    return
  }
  func.func @transform_0(%arg0: i32) -> (i32, i32, i32) {
    %c0_i32 = arith.constant 0 : i32
    %c0_i32_0 = arith.constant 0 : i32
    %c0_i32_1 = arith.constant 0 : i32
    return %arg0, %c0_i32, %c0_i32_0 : i32, i32, i32
  }
  func.func @transform_1(%arg0: i32) -> (i32, i32) {
    %c0_i32 = arith.constant 0 : i32
    %c0_i32_0 = arith.constant 0 : i32
    %c0_i32_1 = arith.constant 0 : i32
    return %c0_i32, %c0_i32_0 : i32, i32
  }
  func.func @transform_2(%arg0: i32) -> (i32, i32) {
    %c0_i32 = arith.constant 0 : i32
    %c0_i32_0 = arith.constant 0 : i32
    %c0_i32_1 = arith.constant 0 : i32
    return %c0_i32, %c0_i32_0 : i32, i32
  }
  func.func @transform_3(%arg0: i32) -> (i32, i32) {
    %c0_i32 = arith.constant 0 : i32
    %c0_i32_0 = arith.constant 0 : i32
    %c0_i32_1 = arith.constant 0 : i32
    return %c0_i32, %c0_i32_0 : i32, i32
  }
  func.func @transform_4(%arg0: i32) -> (i32, i32) {
    %c0_i32 = arith.constant 0 : i32
    %c0_i32_0 = arith.constant 0 : i32
    return %arg0, %c0_i32 : i32, i32
  }
  func.func @transform_5(%arg0: i32) -> (i32, i32) {
    %c0_i32 = arith.constant 0 : i32
    %c0_i32_0 = arith.constant 0 : i32
    return %arg0, %c0_i32 : i32, i32
  }
}

</mosaic_0001>

<llo_original>
// kernel: global_attn.1
$region0: #{global_attn.1}
  #allocation0 [shape = 'u32[]', space=smem, size = 0x4, offset = 0x4, fixed_abs, tag = 'smem constant byte address 0x4 - core index']
  #allocation1 [shape = 'u32[144,128]{1,0:T(1,128)}', space=vmem, size = 0x12000, scoped, tag = 'internal scratch']
  %s0 = inlined_call_operand.hbm [shape: f32[2,8,32], index: 0, kind: input, shape index: {}]
  %s1 = inlined_call_operand.hbm [shape: f32[32,32], index: 1, kind: input, shape index: {}]
  %s2 = inlined_call_operand.vmem [shape: f32[1,32], index: 2, kind: input, shape index: {}]
  %s3 = inlined_call_operand.vmem [shape: f32[1,32], index: 3, kind: input, shape index: {}]
  %s4 = inlined_call_operand.hbm [shape: f32[2,32], index: 4, kind: output, shape index: {0}]
  %s5 = inlined_call_operand.hbm [shape: f32[2,8], index: 5, kind: output, shape index: {1}]
  %6 = xla_tuple %s4, %s5
  %s7 = sld [smem:[#allocation0]]
  $region42: #{global_attn.1} parent=0
    _
  %s9 = ssub.s32 1, %s7
  %s10 = scalar_select 0, %s9, %s7
  $region1: #{global_attn.1} parent=0
    #allocation2 [shape = 'u8[8192]{0}', space=vmem, size = 0x2000, scoped, tag = 'input window, operand 0, single buffered']
    #allocation3 [shape = 's32[1]{0}', space=sflag, size = 0x4, scoped, tag = 'scoped memory for global_attn.1']
    #allocation4 [shape = 's32[1]{0}', space=sflag, size = 0x4, scoped, tag = 'scoped memory for global_attn.1']
    #allocation5 [shape = 'u8[16384]{0}', space=vmem, size = 0x4000, scoped, tag = 'input window, operand 1, single buffered']
    #allocation6 [shape = 's32[1]{0}', space=sflag, size = 0x4, scoped, tag = 'scoped memory for global_attn.1']
    #allocation7 [shape = 'u8[1024]{0}', space=vmem, size = 0x400, scoped, tag = 'output window, operand 0, single buffered']
    #allocation8 [shape = 'u8[1024]{0}', space=vmem, size = 0x400, scoped, tag = 'output window, operand 1, single buffered']
    #allocation9 [shape = 's32[1]{0}', space=sflag, size = 0x4, scoped, tag = 'scoped memory for global_attn.1']
    %11 = vsyncpa [#allocation3], 0
    %12 = vsyncpa [#allocation6], 0
    %13 = vsyncpa [#allocation4], 0
    %14 = vsyncpa [#allocation9], 0
    // Predicated region
    $region2: #{global_attn.1} parent=1 // pred_check
      _
    $region3: #{global_attn.1} parent=1 // pred_check_branch
      %16 = sbr.rel (0) target = $region5
    $region4: #{global_attn.1} parent=1 // pred_region
      %s18 = ssub.s32 256, 256
      %19 = vsyncadd [#allocation3], %s18
      %s20 = sshll.u32 [#allocation2], 4
      %s21 = int_to_ptr.vmem [resolvable:$true] %s20
      %26 = dma.hbm_to_vmem [thread:$0]  %s0, 256, %s21, [#allocation3], 128, 128, 8
    $region5: #{global_attn.1} parent=1 // pred_fallthru
      _
    // Predicated region
    $region6: #{global_attn.1} parent=1 // pred_check
      _
    $region7: #{global_attn.1} parent=1 // pred_check_branch
      %28 = sbr.rel (0) target = $region9
    $region8: #{global_attn.1} parent=1 // pred_region
      %s30 = ssub.s32 512, 512
      %31 = vsyncadd [#allocation6], %s30
      %s32 = sshll.u32 [#allocation5], 4
      %s33 = int_to_ptr.vmem [resolvable:$true] %s32
      %38 = dma.hbm_to_vmem [thread:$0]  %s1, 512, %s33, [#allocation6], 128, 128, 8
    $region9: #{global_attn.1} parent=1 // pred_fallthru
      _
    // Predicated region
    $region10: #{global_attn.1} parent=1 // pred_check
      _
    $region11: #{global_attn.1} parent=1 // pred_check_branch
      %40 = sbr.rel (0) target = $region13
    $region12: #{global_attn.1} parent=1 // pred_region
      _
    $region13: #{global_attn.1} parent=1 // pred_fallthru
      _
    // Predicated region
    $region14: #{global_attn.1} parent=1 // pred_check
      _
    $region15: #{global_attn.1} parent=1 // pred_check_branch
      %42 = sbr.rel (0) target = $region17
    $region16: #{global_attn.1} parent=1 // pred_region
      _
    $region17: #{global_attn.1} parent=1 // pred_fallthru
      _
    // Predicated region
    $region18: #{global_attn.1} parent=1 // pred_check
      _
    $region19: #{global_attn.1} parent=1 // pred_check_branch
      %44 = sbr.rel (0) target = $region21
    $region20: #{global_attn.1} parent=1 // pred_region
      %45 = dma.done [#allocation3], 256
    $region21: #{global_attn.1} parent=1 // pred_fallthru
      _
    // Predicated region
    $region22: #{global_attn.1} parent=1 // pred_check
      _
    $region23: #{global_attn.1} parent=1 // pred_check_branch
      %47 = sbr.rel (0) target = $region25
    $region24: #{global_attn.1} parent=1 // pred_region
      %48 = dma.done [#allocation6], 512
    $region25: #{global_attn.1} parent=1 // pred_fallthru
      _
    %v49 = vld [vmem:[#allocation5] sm:$0xff]
    %v50 = vld [vmem:[#allocation5 + $0x8] sm:$0xff]
    %v51 = vld [vmem:[#allocation5 + $0x10] sm:$0xff]
    %v52 = vld [vmem:[#allocation5 + $0x18] sm:$0xff]
    %v53 = vld [vmem:[%s2] sm:$0x1]
    %v54 = vld [vmem:[%s3] sm:$0x1]
    %v55 = vld [vmem:[#allocation2] sm:$0xff]
    %v56 = vld [vmem:[#allocation2 + $0x8] sm:$0xff]
    %v58 = vlaneseq
    %v59 = vshrl.u32 %v58, 7
    %v60 = vsub.s32 0, %v59
    %v61 = vrot.slane %v53, %v60
    %vm63 = vcmask 261120
    %v65 = vsel %vm63, %v55, 0
    %v68 = vsel %vm63, %v56, 0
    %70 = vmatprep.subr.mxu0 0.0
    %71 = vmatpush1.msra.mxu0 0.0
    %72 = vmatprep.subr.mxu0 0.0
    %73 = vmatpush1.msra.mxu0 0.0
    %74 = vmatprep.subr.mxu0 0.0
    %75 = vmatpush1.msra.mxu0 0.0
    %76 = vmatprep.subr.mxu0 0.0
    %77 = vmatpush1.msra.mxu0 0.0
    %78 = vmatprep.subr.mxu0 0.0
    %79 = vmatpush1.msra.mxu0 0.0
    %80 = vmatprep.subr.mxu0 0.0
    %81 = vmatpush1.msra.mxu0 0.0
    %82 = vmatprep.subr.mxu0 0.0
    %83 = vmatpush1.msra.mxu0 0.0
    %84 = vmatprep.subr.mxu0 0.0
    %85 = vmatpush1.msra.mxu0 0.0
    %86 = vmatprep.subr.mxu0 0.0
    %87 = vmatpush1.msra.mxu0 0.0
    %88 = vmatprep.subr.mxu0 0.0
    %89 = vmatpush1.msra.mxu0 0.0
    %90 = vmatprep.subr.mxu0 0.0
    %91 = vmatpush1.msra.mxu0 0.0
    %92 = vmatprep.subr.mxu0 0.0
    %93 = vmatpush1.msra.mxu0 0.0
    %94 = vmatprep.subr.mxu0 0.0
    %95 = vmatpush1.msra.mxu0 %v52
    %96 = vmatprep.subr.mxu0 0.0
    %97 = vmatpush1.msra.mxu0 %v51
    %98 = vmatprep.subr.mxu0 0.0
    %99 = vmatpush1.msra.mxu0 %v50
    %100 = vmatprep.subr.mxu0 0.0
    %101 = vmatpush1.msra.mxu0 %v49
    %102 = vmatprep.subr.mxu0 0.0
    %103 = vmatpush2.msra.mxu0 0.0
    %104 = vmatprep.subr.mxu0 0.0
    %105 = vmatpush2.msra.mxu0 0.0
    %106 = vmatprep.subr.mxu0 0.0
    %107 = vmatpush2.msra.mxu0 0.0
    %108 = vmatprep.subr.mxu0 0.0
    %109 = vmatpush2.msra.mxu0 0.0
    %110 = vmatprep.subr.mxu0 0.0
    %111 = vmatpush2.msra.mxu0 0.0
    %112 = vmatprep.subr.mxu0 0.0
    %113 = vmatpush2.msra.mxu0 0.0
    %114 = vmatprep.subr.mxu0 0.0
    %115 = vmatpush2.msra.mxu0 0.0
    %116 = vmatprep.subr.mxu0 0.0
    %117 = vmatpush2.msra.mxu0 0.0
    %118 = vmatprep.subr.mxu0 0.0
    %119 = vmatpush2.msra.mxu0 0.0
    %120 = vmatprep.subr.mxu0 0.0
    %121 = vmatpush2.msra.mxu0 0.0
    %122 = vmatprep.subr.mxu0 0.0
    %123 = vmatpush2.msra.mxu0 0.0
    %124 = vmatprep.subr.mxu0 0.0
    %125 = vmatpush2.msra.mxu0 0.0
    %126 = vmatprep.subr.mxu0 0.0
    %127 = vmatpush2.msra.mxu0 0.0
    %128 = vmatprep.subr.mxu0 0.0
    %129 = vmatpush2.msra.mxu0 0.0
    %130 = vmatprep.subr.mxu0 0.0
    %131 = vmatpush2.msra.mxu0 0.0
    %132 = vmatprep.subr.mxu0 0.0
    %133 = vmatpush2.msra.mxu0 0.0
    %134 = vmatprep.mubr.f32.mxu0 0.0
    %135 = vmatmul.mubr.f32.gmra.mxu0 %v65
    %v136 = vpop.f32.mrf.mxu0
    %v137 = vadd.f32 %v61, %v136
    %v138 = vpop.f32.mrf.mxu0
    %139 = vmatprep.mubr.f32.mxu0 0.0
    %140 = vmatmul.mubr.f32.gmra.mxu0 %v68
    %v141 = vpop.f32.mrf.mxu0
    %v142 = vadd.f32 %v61, %v141
    %v143 = vpop.f32.mrf.mxu0
    %144 = vdwg.mxu0
    %v145 = vtanh.pop %v137
    %v146 = vtanh.pop %v142
    %v148 = vlaneseq
    %v149 = vshrl.u32 %v148, 7
    %v150 = vsub.s32 0, %v149
    %v151 = vrot.slane %v54, %v150
    %v153 = vmul.f32 %v145, %v151
    %v154 = vmul.f32 %v146, %v151
    %v155 = vsel %vm63, %v153, 0.0
    %156 = vadd.xlane.f32.xlu0 %v155
    %v157 = vpop.xlane.xlu0 %156
    %v158 = vsel %vm63, %v154, 0.0
    %159 = vadd.xlane.f32.xlu0 %v158
    %v160 = vpop.xlane.xlu0 %159
    %v163 = vlaneseq
    %v164 = vand.u32 %v163, 127
    %v165 = vlaneseq
    %v166 = vshrl.u32 %v165, 7
    %v167 = vsub.s32 %v164, %v166
    %v168 = vrot.slane %v157, %v167
    %v169 = vlaneseq
    %v170 = vshrl.u32 %v169, 7
    %v171 = vsub.s32 %v164, %v170
    %v172 = vrot.slane %v160, %v171
    %vm173 = vcmask 1041409
    %v174 = vsel %vm173, %v172, %v168
    %vm176 = vcmask 58368
    %v177 = vsel %vm176, %v174, -inf
    %178 = vmax.xlane.f32.xlu0 %v177
    %v179 = vpop.xlane.xlu0 %178
    %v181 = vlaneseq
    %v182 = vshrl.u32 %v181, 7
    %v183 = vsub.s32 0, %v182
    %v184 = vrot.slane %v179, %v183
    %v185 = vlaneseq
    %v186 = vshrl.u32 %v185, 7
    %v187 = vsub.s32 1, %v186
    %v188 = vrot.slane %v179, %v187
    %v191 = vsub.f32 %v157, %v184
    %v192 = vsub.f32 %v160, %v188
    %v193 = vmul.f32 %v191, 1.442695
    %v194 = vpow.pop %v193
    %v195 = vmul.f32 %v192, 1.442695
    %v196 = vpow.pop %v195
    %199 = vset.pattern.permute.xlu0 0
    %200 = vperm.xlu0 %199, %v194
    %v201 = vpop.permute.xlu0 %200
    %202 = vset.pattern.permute.xlu0 0
    %203 = vperm.xlu0 %202, %v196
    %v204 = vpop.permute.xlu0 %203
    %v205 = vlaneseq
    %v206 = vshrl.u32 %v205, 7
    %v207 = vsub.s32 %v164, %v206
    %v208 = vrot.slane %v201, %v207
    %v209 = vlaneseq
    %v210 = vshrl.u32 %v209, 7
    %v211 = vsub.s32 %v164, %v210
    %v212 = vrot.slane %v204, %v211
    %v213 = vsel %vm173, %v212, %v208
    %v215 = vsel %vm176, %v213, 0.0
    %216 = vadd.xlane.f32.xlu0 %v215
    %v217 = vpop.xlane.xlu0 %216
    %v218 = vrcp.pop %v217
    %v220 = vlaneseq
    %v221 = vshrl.u32 %v220, 7
    %v222 = vsub.s32 0, %v221
    %v223 = vrot.slane %v218, %v222
    %v224 = vlaneseq
    %v225 = vshrl.u32 %v224, 7
    %v226 = vsub.s32 1, %v225
    %v227 = vrot.slane %v218, %v226
    %v230 = vmul.f32 %v194, %v223
    %v231 = vmul.f32 %v196, %v227
    %233 = vset.pattern.permute.xlu0 0
    %234 = vperm.xlu0 %233, %v230
    %v235 = vpop.permute.xlu0 %234
    %238 = vset.pattern.permute.xlu0 0
    %239 = vperm.xlu0 %238, %v231
    %v240 = vpop.permute.xlu0 %239
    %v242 = vmul.f32 %v235, %v55
    %v243 = vmul.f32 %v240, %v56
    %v244 = vsel %vm63, %v242, 0.0
    %v245 = vrot.slane %v244, 4
    %v246 = vadd.f32 %v244, %v245
    %v247 = vrot.slane %v246, 2
    %v248 = vadd.f32 %v246, %v247
    %v249 = vrot.slane %v248, 1
    %v250 = vadd.f32 %v248, %v249
    %v251 = vsel %vm63, %v243, 0.0
    %v252 = vrot.slane %v251, 4
    %v253 = vadd.f32 %v251, %v252
    %v254 = vrot.slane %v253, 2
    %v255 = vadd.f32 %v253, %v254
    %v256 = vrot.slane %v255, 1
    %v257 = vadd.f32 %v255, %v256
    %v258 = vadd.f32 %v250, 0.0
    %v259 = vadd.f32 %v257, 0.0
    %v262 = vsel %vm173, %v259, %v258
    %vm264 = vcmask 254976
    %265 = vst.msk [vmem:[#allocation7] sm:$0x3] %vm264, %v262
    %v266 = vlaneseq
    %v267 = vshrl.u32 %v266, 7
    %v268 = vsub.s32 %v164, %v267
    %v269 = vrot.slane %v235, %v268
    %v270 = vlaneseq
    %v271 = vshrl.u32 %v270, 7
    %v272 = vsub.s32 %v164, %v271
    %v273 = vrot.slane %v240, %v272
    %v274 = vsel %vm173, %v273, %v269
    %276 = vst.msk [vmem:[#allocation8] sm:$0x3] %vm176, %v274
    // Predicated region
    $region26: #{global_attn.1} parent=1 // pred_check
      _
    $region27: #{global_attn.1} parent=1 // pred_check_branch
      %278 = sbr.rel (0) target = $region29
    $region28: #{global_attn.1} parent=1 // pred_region
      %s280 = ssub.s32 32, 32
      %281 = vsyncadd [#allocation4], %s280
      %s283 = sshll.u32 [#allocation7], 4
      %s284 = int_to_ptr.vmem [resolvable:$true] %s283
      %286 = dma.vmem_to_hbm [thread:$0]  %s284, 32, %s4, [#allocation4]
    $region29: #{global_attn.1} parent=1 // pred_fallthru
      _
    // Predicated region
    $region30: #{global_attn.1} parent=1 // pred_check
      _
    $region31: #{global_attn.1} parent=1 // pred_check_branch
      %288 = sbr.rel (0) target = $region33
    $region32: #{global_attn.1} parent=1 // pred_region
      %s290 = ssub.s32 32, 32
      %291 = vsyncadd [#allocation9], %s290
      %s293 = sshll.u32 [#allocation8], 4
      %s294 = int_to_ptr.vmem [resolvable:$true] %s293
      %296 = dma.vmem_to_hbm [thread:$0]  %s294, 32, %s5, [#allocation9]
    $region33: #{global_attn.1} parent=1 // pred_fallthru
      _
    // Predicated region
    $region34: #{global_attn.1} parent=1 // pred_check
      _
    $region35: #{global_attn.1} parent=1 // pred_check_branch
      %298 = sbr.rel (0) target = $region37
    $region36: #{global_attn.1} parent=1 // pred_region
      %299 = dma.done [#allocation4], 32
    $region37: #{global_attn.1} parent=1 // pred_fallthru
      _
    // Predicated region
    $region38: #{global_attn.1} parent=1 // pred_check
      _
    $region39: #{global_attn.1} parent=1 // pred_check_branch
      %301 = sbr.rel (0) target = $region41
    $region40: #{global_attn.1} parent=1 // pred_region
      %302 = dma.done [#allocation9], 32
    $region41: #{global_attn.1} parent=1 // pred_fallthru
      _
    %303 = vsyncpa [#allocation3], 1
    %304 = vsyncpa [#allocation6], 1
    %305 = vsyncpa [#allocation4], 1
    %306 = vsyncpa [#allocation9], 1

</llo_original>
